<compile_context>
chip_gen: v5e
topology: v5e:2x2
jax: 0.10.0
libtpu: 0.0.40
codegen_flags: <defaults>
</compile_context>

<pallas_src>
import jax
import jax.numpy as jnp
from jax.experimental import pallas as pl
from jax.experimental.pallas import tpu as pltpu

_LANE = 128      # lane width: last-dim padding target
_SUBLANE = 8     # sublane width: batch-tile alignment (f32)
_MAX_TM = 512    # batch tile cap; keeps VMEM use well under the scoped limit
                 # on all of v5e / v6e / v7x at these feature widths.


def _round_up(x, m):
    return ((x + m - 1) // m) * m


# ---------------------------------------------------------------------------
# Kernels (one batch tile per grid step; weights resident across the grid)
# ---------------------------------------------------------------------------
def _encoder_kernel(x_ref, we_ref, be_ref, o_ref):
    # out = x @ We + be
    o_ref[...] = (
        jnp.dot(x_ref[...], we_ref[...], preferred_element_type=jnp.float32)
        + be_ref[...]
    ).astype(o_ref.dtype)


def _autoencoder_kernel(x_ref, we_ref, be_ref, wd_ref, bd_ref, o_ref):
    # h   = x @ We + be
    # out = h @ Wd + bd   (encoder + decoder fused: h never leaves VMEM)
    h = (
        jnp.dot(x_ref[...], we_ref[...], preferred_element_type=jnp.float32)
        + be_ref[...]
    )
    o_ref[...] = (
        jnp.dot(h.astype(wd_ref.dtype), wd_ref[...],
                preferred_element_type=jnp.float32)
        + bd_ref[...]
    ).astype(o_ref.dtype)


# ---------------------------------------------------------------------------
# Forward builder (closes over static dims; jitted once per input shape)
# ---------------------------------------------------------------------------
def _make_forward(self_training, d_in, d_h, d_in_p, d_h_p):
    def forward(x, we_t, be_r, wd_t, bd_r):
        B = x.shape[0]
        # Batch tile: multiple of 8 sublanes, capped so double-buffered
        # activations + resident (padded) weights fit comfortably in VMEM.
        tm = min(_MAX_TM, _round_up(max(B, 1), _SUBLANE))
        grid = (pl.cdiv(B, tm),)

        # Zero-pad the feature axis to the lane-dense width (exact: padded
        # weight columns/rows are zero, padded output columns are sliced off).
        x_p = x if d_in_p == d_in else jnp.pad(x, ((0, 0), (0, d_in_p - d_in)))

        x_spec = pl.BlockSpec((tm, d_in_p), lambda i: (i, 0))
        we_spec = pl.BlockSpec((d_in_p, d_h_p), lambda i: (0, 0))
        be_spec = pl.BlockSpec((1, d_h_p), lambda i: (0, 0))
        cparams = pltpu.CompilerParams(dimension_semantics=("parallel",))

        if self_training:
            wd_spec = pl.BlockSpec((d_h_p, d_in_p), lambda i: (0, 0))
            bd_spec = pl.BlockSpec((1, d_in_p), lambda i: (0, 0))
            out_spec = pl.BlockSpec((tm, d_in_p), lambda i: (i, 0))
            cost = pl.CostEstimate(
                flops=4 * B * d_in_p * d_h_p,
                transcendentals=0,
                bytes_accessed=4 * (2 * B * d_in_p + 2 * d_in_p * d_h_p
                                    + d_in_p + d_h_p),
            )
            out = pl.pallas_call(
                _autoencoder_kernel,
                out_shape=jax.ShapeDtypeStruct((B, d_in_p), x.dtype),
                grid=grid,
                in_specs=[x_spec, we_spec, be_spec, wd_spec, bd_spec],
                out_specs=out_spec,
                compiler_params=cparams,
                cost_estimate=cost,
            )(x_p, we_t, be_r, wd_t, bd_r)
            return out if d_in_p == d_in else out[:, :d_in]
        else:
            out_spec = pl.BlockSpec((tm, d_h_p), lambda i: (i, 0))
            cost = pl.CostEstimate(
                flops=2 * B * d_in_p * d_h_p,
                transcendentals=0,
                bytes_accessed=4 * (B * d_in_p + d_in_p * d_h_p
                                    + d_h_p + B * d_h_p),
            )
            out = pl.pallas_call(
                _encoder_kernel,
                out_shape=jax.ShapeDtypeStruct((B, d_h_p), x.dtype),
                grid=grid,
                in_specs=[x_spec, we_spec, be_spec],
                out_specs=out_spec,
                compiler_params=cparams,
                cost_estimate=cost,
            )(x_p, we_t, be_r)
            return out if d_h_p == d_h else out[:, :d_h]

    return forward


# ---------------------------------------------------------------------------
# Module wrapper
# ---------------------------------------------------------------------------
class MyAutoEncoderLayer:
    """JAX/Pallas port of the PyTorch myAutoEncoderLayer."""

    def __init__(self, input_dim, output_dim, self_training=False, key=None):
        self.in_features = input_dim
        self.hidden_features = output_dim
        self.is_training_self = self_training

        key = jax.random.PRNGKey(0) if key is None else key
        k1, k2, k3, k4 = jax.random.split(key, 4)

        # nn.Linear-style init: U(-1/sqrt(fan_in), +1/sqrt(fan_in)).
        bnd_e = 1.0 / (input_dim ** 0.5)
        bnd_d = 1.0 / (output_dim ** 0.5)
        # PyTorch stores weight as (out, in); keep that convention for params.
        self.We = jax.random.uniform(k1, (output_dim, input_dim), jnp.float32,
                                     -bnd_e, bnd_e)
        self.be = jax.random.uniform(k2, (output_dim,), jnp.float32,
                                     -bnd_e, bnd_e)
        self.Wd = jax.random.uniform(k3, (input_dim, output_dim), jnp.float32,
                                     -bnd_d, bnd_d)
        self.bd = jax.random.uniform(k4, (input_dim,), jnp.float32,
                                     -bnd_d, bnd_d)

        # One-time glue, hoisted out of the hot path: transpose to (in, out)
        # for x @ W, zero-pad feature dims to lane-dense multiples of 128,
        # reshape biases to (1, out) for in-kernel broadcast.
        d_in_p = _round_up(input_dim, _LANE)
        d_h_p = _round_up(output_dim, _LANE)
        self._d_in_p, self._d_h_p = d_in_p, d_h_p
        self._We_t = (jnp.zeros((d_in_p, d_h_p), jnp.float32)
                      .at[:input_dim, :output_dim].set(self.We.T))
        self._be_r = (jnp.zeros((1, d_h_p), jnp.float32)
                      .at[0, :output_dim].set(self.be))
        self._Wd_t = (jnp.zeros((d_h_p, d_in_p), jnp.float32)
                      .at[:output_dim, :input_dim].set(self.Wd.T))
        self._bd_r = (jnp.zeros((1, d_in_p), jnp.float32)
                      .at[0, :input_dim].set(self.bd))

        self._forward = jax.jit(
            _make_forward(self_training, input_dim, output_dim, d_in_p, d_h_p))

    def __call__(self, x):
        return self._forward(x, self._We_t, self._be_r, self._Wd_t, self._bd_r)

    # pure-JAX reference (for verification)
    def reference(self, x):
        h = x @ self.We.T + self.be
        if self.is_training_self:
            return h @ self.Wd.T + self.bd
        return h

    # TODO(synk): lock_grad/acquire_grad are autograd plumbing with no
    # forward-pass Pallas equivalent; omitted.


# ---------------------------------------------------------------------------
# Main
# ---------------------------------------------------------------------------
if __name__ == "__main__":
    key = jax.random.PRNGKey(0)
    k_x, k_params = jax.random.split(key)

    batch, input_dim, hidden_dim = 8, 64, 32
    x = jax.random.normal(k_x, (batch, input_dim), jnp.float32)

    ok = True

    # Mode 1: SelfTraining=False -> encoder output (batch, hidden_dim)
    layer_enc = MyAutoEncoderLayer(input_dim, hidden_dim,
                                   self_training=False, key=k_params)
    out_enc = jax.block_until_ready(layer_enc(x))
    ref_enc = layer_enc.reference(x)
    ok &= out_enc.shape == (batch, hidden_dim)
    ok &= bool(jnp.allclose(out_enc, ref_enc, atol=1e-5, rtol=1e-5))

    # Mode 2: SelfTraining=True -> reconstruction (batch, input_dim)
    layer_ae = MyAutoEncoderLayer(input_dim, hidden_dim,
                                  self_training=True, key=k_params)
    out_ae = jax.block_until_ready(layer_ae(x))
    ref_ae = layer_ae.reference(x)
    ok &= out_ae.shape == (batch, input_dim)
    ok &= bool(jnp.allclose(out_ae, ref_ae, atol=1e-5, rtol=1e-5))

    if ok:
        print("KERNEL_OK")
    else:
        raise SystemExit("mismatch between Pallas kernel and reference")
</pallas_src>

<mosaic_0001>
module attributes {stable_mosaic.version = 11 : i64} {
  func.func @_encoder_kernel(%arg0: i32, %arg1: memref<8x128xf32, #tpu.memory_space<vmem>>, %arg2: memref<128x128xf32, #tpu.memory_space<vmem>>, %arg3: memref<1x128xf32, #tpu.memory_space<vmem>>, %arg4: memref<8x128xf32, #tpu.memory_space<vmem>>) attributes {dimension_semantics = [#tpu.dimension_semantics<parallel>], iteration_bounds = array<i64: 1>, scalar_prefetch = 0 : i64, scratch_operands = 0 : i64, tpu.core_type = #tpu.core_type<tc>, window_params = [{transform_indices = @transform_0, window_bounds = array<i64: 8, 128>}, {pipeline_mode = #tpu.pipeline_mode<synchronous>, transform_indices = @transform_1, window_bounds = array<i64: 128, 128>}, {pipeline_mode = #tpu.pipeline_mode<synchronous>, transform_indices = @transform_2, window_bounds = array<i64: 1, 128>}, {transform_indices = @transform_3, window_bounds = array<i64: 8, 128>}]} {
    %c0 = arith.constant 0 : index
    %c0_0 = arith.constant 0 : index
    %0 = vector.load %arg1[%c0, %c0_0] : memref<8x128xf32, #tpu.memory_space<vmem>>, vector<8x128xf32>
    %c0_1 = arith.constant 0 : index
    %c0_2 = arith.constant 0 : index
    %1 = vector.load %arg2[%c0_1, %c0_2] : memref<128x128xf32, #tpu.memory_space<vmem>>, vector<128x128xf32>
    %cst = arith.constant dense<0.000000e+00> : vector<8x128xf32>
    %2 = tpu.matmul %0, %1, %cst {dimension_numbers = #tpu.dot_dimension_numbers<[1], [0], [0], [1], [0, 0, 1, 1], [], []>} : vector<8x128xf32>, vector<128x128xf32>, vector<8x128xf32> -> vector<8x128xf32>
    %c0_3 = arith.constant 0 : index
    %c0_4 = arith.constant 0 : index
    %3 = vector.load %arg3[%c0_3, %c0_4] : memref<1x128xf32, #tpu.memory_space<vmem>>, vector<1x128xf32>
    %4 = vector.broadcast %3 : vector<1x128xf32> to vector<8x128xf32>
    %5 = arith.addf %2, %4 : vector<8x128xf32>
    %c0_5 = arith.constant 0 : index
    %c0_6 = arith.constant 0 : index
    %6 = vector.load %arg4[%c0_5, %c0_6] : memref<8x128xf32, #tpu.memory_space<vmem>>, vector<8x128xf32>
    tpu.vector_store %arg4[%c0_5, %c0_6], %5 {strides = array<i32>} : memref<8x128xf32, #tpu.memory_space<vmem>>, vector<8x128xf32>,
    return
  }
  func.func @transform_0(%arg0: i32) -> (i32, i32) {
    %c0_i32 = arith.constant 0 : i32
    %c0_i32_0 = arith.constant 0 : i32
    return %arg0, %c0_i32 : i32, i32
  }
  func.func @transform_1(%arg0: i32) -> (i32, i32) {
    %c0_i32 = arith.constant 0 : i32
    %c0_i32_0 = arith.constant 0 : i32
    %c0_i32_1 = arith.constant 0 : i32
    return %c0_i32, %c0_i32_0 : i32, i32
  }
  func.func @transform_2(%arg0: i32) -> (i32, i32) {
    %c0_i32 = arith.constant 0 : i32
    %c0_i32_0 = arith.constant 0 : i32
    %c0_i32_1 = arith.constant 0 : i32
    return %c0_i32, %c0_i32_0 : i32, i32
  }
  func.func @transform_3(%arg0: i32) -> (i32, i32) {
    %c0_i32 = arith.constant 0 : i32
    %c0_i32_0 = arith.constant 0 : i32
    return %arg0, %c0_i32 : i32, i32
  }
}

</mosaic_0001>

<llo_original>
// kernel: forward.1
$region0: #{forward.1}
  #allocation0 [shape = 'u32[]', space=smem, size = 0x4, offset = 0x4, fixed_abs, tag = 'smem constant byte address 0x4 - core index']
  #allocation1 [shape = 'u32[72,128]{1,0:T(1,128)}', space=vmem, size = 0x9000, scoped, tag = 'internal scratch']
  %s0 = inlined_call_operand.vmem [shape: f32[8,128], index: 0, kind: input, shape index: {}]
  %s1 = inlined_call_operand.hbm [shape: f32[128,128], index: 1, kind: input, shape index: {}]
  %s2 = inlined_call_operand.vmem [shape: f32[1,128], index: 2, kind: input, shape index: {}]
  %s3 = inlined_call_operand.hbm [shape: f32[8,128], index: 3, kind: output, shape index: {}]
  %s4 = sld [smem:[#allocation0]]
  $region26: #{forward.1} parent=0
    _
  %s6 = ssub.s32 1, %s4
  %s7 = scalar_select 0, %s6, %s4
  $region1: #{forward.1} parent=0
    #allocation2 [shape = 'u8[65536]{0}', space=vmem, size = 0x10000, scoped, tag = 'input window, operand 1, single buffered']
    #allocation3 [shape = 's32[1]{0}', space=sflag, size = 0x4, scoped, tag = 'scoped memory for forward.1']
    #allocation4 [shape = 's32[1]{0}', space=sflag, size = 0x4, scoped, tag = 'scoped memory for forward.1']
    #allocation5 [shape = 'u8[4096]{0}', space=vmem, size = 0x1000, scoped, tag = 'output window, operand 0, single buffered']
    %8 = vsyncpa [#allocation3], 0
    %9 = vsyncpa [#allocation4], 0
    // Predicated region
    $region2: #{forward.1} parent=1 // pred_check
      _
    $region3: #{forward.1} parent=1 // pred_check_branch
      %11 = sbr.rel (0) target = $region5
    $region4: #{forward.1} parent=1 // pred_region
      _
    $region5: #{forward.1} parent=1 // pred_fallthru
      _
    // Predicated region
    $region6: #{forward.1} parent=1 // pred_check
      _
    $region7: #{forward.1} parent=1 // pred_check_branch
      %13 = sbr.rel (0) target = $region9
    $region8: #{forward.1} parent=1 // pred_region
      %15 = vsyncadd [#allocation3], 0
      %s16 = sshll.u32 %s1, 4
      %s17 = int_to_ptr.hbm [resolvable:$true] %s16
      %s18 = sshll.u32 [#allocation2], 4
      %s19 = int_to_ptr.vmem [resolvable:$true] %s18
      %24 = dma.hbm_to_vmem [thread:$0]  %s17, 2048, %s19, [#allocation3], 128, 128, 8
    $region9: #{forward.1} parent=1 // pred_fallthru
      _
    // Predicated region
    $region10: #{forward.1} parent=1 // pred_check
      _
    $region11: #{forward.1} parent=1 // pred_check_branch
      %26 = sbr.rel (0) target = $region13
    $region12: #{forward.1} parent=1 // pred_region
      _
    $region13: #{forward.1} parent=1 // pred_fallthru
      _
    // Predicated region
    $region14: #{forward.1} parent=1 // pred_check
      _
    $region15: #{forward.1} parent=1 // pred_check_branch
      %28 = sbr.rel (0) target = $region17
    $region16: #{forward.1} parent=1 // pred_region
      %30 = dma.done [#allocation3], 2048
    $region17: #{forward.1} parent=1 // pred_fallthru
      _
    %v31 = vld [vmem:[%s0] sm:$0xff]
    %v32 = vld [vmem:[#allocation2] sm:$0xff]
    %v33 = vld [vmem:[#allocation2 + $0x8] sm:$0xff]
    %v34 = vld [vmem:[#allocation2 + $0x10] sm:$0xff]
    %v35 = vld [vmem:[#allocation2 + $0x18] sm:$0xff]
    %v36 = vld [vmem:[#allocation2 + $0x20] sm:$0xff]
    %v37 = vld [vmem:[#allocation2 + $0x28] sm:$0xff]
    %v38 = vld [vmem:[#allocation2 + $0x30] sm:$0xff]
    %v39 = vld [vmem:[#allocation2 + $0x38] sm:$0xff]
    %v40 = vld [vmem:[#allocation2 + $0x40] sm:$0xff]
    %v41 = vld [vmem:[#allocation2 + $0x48] sm:$0xff]
    %v42 = vld [vmem:[#allocation2 + $0x50] sm:$0xff]
    %v43 = vld [vmem:[#allocation2 + $0x58] sm:$0xff]
    %v44 = vld [vmem:[#allocation2 + $0x60] sm:$0xff]
    %v45 = vld [vmem:[#allocation2 + $0x68] sm:$0xff]
    %v46 = vld [vmem:[#allocation2 + $0x70] sm:$0xff]
    %v47 = vld [vmem:[#allocation2 + $0x78] sm:$0xff]
    %v48 = vld [vmem:[%s2] sm:$0x1]
    %v50 = vperm.slane %v48, 0
    %52 = vmatpush.msra.mxu0 %v47
    %53 = vmatpush.msra.mxu0 %v46
    %54 = vmatpush.msra.mxu0 %v45
    %55 = vmatpush.msra.mxu0 %v44
    %56 = vmatpush.msra.mxu0 %v43
    %57 = vmatpush.msra.mxu0 %v42
    %58 = vmatpush.msra.mxu0 %v41
    %59 = vmatpush.msra.mxu0 %v40
    %60 = vmatpush.msra.mxu0 %v39
    %61 = vmatpush.msra.mxu0 %v38
    %62 = vmatpush.msra.mxu0 %v37
    %63 = vmatpush.msra.mxu0 %v36
    %64 = vmatpush.msra.mxu0 %v35
    %65 = vmatpush.msra.mxu0 %v34
    %66 = vmatpush.msra.mxu0 %v33
    %67 = vmatpush.msra.mxu0 %v32
    %68 = vmatmul.f32.gmra.mxu0 %v31
    %v69 = vpop.f32.mrf.mxu0
    %v70 = vadd.f32 %v50, %v69
    %71 = vdwg.mxu0
    %72 = vst [vmem:[#allocation5] sm:$0xff] %v70
    // Predicated region
    $region18: #{forward.1} parent=1 // pred_check
      _
    $region19: #{forward.1} parent=1 // pred_check_branch
      %74 = sbr.rel (0) target = $region21
    $region20: #{forward.1} parent=1 // pred_region
      %76 = vsyncadd [#allocation4], 0
      %s78 = sshll.u32 [#allocation5], 4
      %s79 = int_to_ptr.vmem [resolvable:$true] %s78
      %s80 = sshll.u32 %s3, 4
      %s81 = int_to_ptr.hbm [resolvable:$true] %s80
      %83 = dma.vmem_to_hbm [thread:$0]  %s79, 128, %s81, [#allocation4]
    $region21: #{forward.1} parent=1 // pred_fallthru
      _
    // Predicated region
    $region22: #{forward.1} parent=1 // pred_check
      _
    $region23: #{forward.1} parent=1 // pred_check_branch
      %85 = sbr.rel (0) target = $region25
    $region24: #{forward.1} parent=1 // pred_region
      %87 = dma.done [#allocation4], 128
    $region25: #{forward.1} parent=1 // pred_fallthru
      _
    %88 = vsyncpa [#allocation3], 1
    %89 = vsyncpa [#allocation4], 1

</llo_original>
